<compile_context>
chip_gen: v5e
topology: v5e:2x2
jax: 0.10.0
libtpu: 0.0.40
codegen_flags: <defaults>
</compile_context>

<pallas_src>
import functools
import math

import jax
import jax.numpy as jnp
from jax.experimental import pallas as pl
from jax.experimental.pallas import tpu as pltpu


# ----------------------------------------------------------------------------
# parameter construction (glue, plain JAX)
# ----------------------------------------------------------------------------
def _fill_up_1d(ksize):
    """1-D bilinear kernel matching fill_up_weights (w[i,j] = k[i]*k[j])."""
    f = math.ceil(ksize / 2)
    c = (2 * f - 1 - f % 2) / (2.0 * f)
    return jnp.array([1.0 - abs(i / f - c) for i in range(ksize)], dtype=jnp.float32)


def _upsample_matrix(in_size, ksize=16, stride=8, padding=4):
    """Matrix U s.t. ConvTranspose1d(in, bilinear kernel) == U @ in."""
    out_size = (in_size - 1) * stride - 2 * padding + ksize
    k1d = _fill_up_1d(ksize)
    oy = jnp.arange(out_size)[:, None]
    iy = jnp.arange(in_size)[None, :]
    ky = oy - iy * stride + padding                       # kernel tap index
    valid = (ky >= 0) & (ky < ksize)
    return jnp.where(valid, k1d[jnp.clip(ky, 0, ksize - 1)], 0.0).astype(jnp.float32)


def init_seg_params(key, out_dim, classes):
    """nn.Conv2d(out_dim, classes, 1): weight ~ N(0, sqrt(2/n)), bias = 0."""
    n = 1 * 1 * classes
    w_seg = jax.random.normal(key, (classes, out_dim), jnp.float32) * math.sqrt(2.0 / n)
    b_seg = jnp.zeros((classes,), jnp.float32)
    return w_seg, b_seg


def _pick_tile(total, cap, multiple):
    """Largest divisor of `total` that is <= cap, preferring multiples of
    `multiple` (keeps blocks aligned, avoids ragged-tail masking)."""
    if total <= cap:
        return total
    best_any, best_mult = 1, None
    for d in range(1, cap + 1):
        if total % d == 0:
            best_any = d
            if d % multiple == 0:
                best_mult = d
    return best_mult if best_mult is not None else best_any


def _vmem_capacity_bytes():
    """Generation-aware VMEM capacity (v5e/v6e 128 MiB, v7x 64 MiB)."""
    try:
        info = pltpu.get_tpu_info()
        cap = getattr(info, "vmem_capacity_bytes", None)
        if cap:
            return int(cap)
    except Exception:
        pass
    return 64 * 1024 * 1024  # conservative fallback (v7x per-TC)


# ----------------------------------------------------------------------------
# Pallas kernels (hot path)
# ----------------------------------------------------------------------------
def _seg_kernel(x_ref, w_ref, b_ref, out_ref, *, matmul_dtype):
    # x: (1, C_in, TILE_M) f32, w: (classes, C_in) f32, b: (classes, 1) f32
    # out: (1, classes, TILE_M) f32
    # Cast to the MXU-native dtype IN-KERNEL (hidden VPU work, no extra HBM pass).
    x = x_ref[0]
    w = w_ref[...]
    if matmul_dtype is not None:
        x = x.astype(matmul_dtype)
        w = w.astype(matmul_dtype)
    acc = jnp.dot(w, x, preferred_element_type=jnp.float32)
    out_ref[0] = acc + b_ref[...]


def _up_softmax_kernel(x_ref, uh_ref, uwt_ref, logsm_ref, sm_ref, xw_ref, y_ref):
    # x:    (1, classes, Hf, Wf) f32  (same block across the OH-tile grid axis)
    # uh:   (TILE_OH, Hf) f32
    # uwt:  (Wf, OW) f32
    # outs: (1, classes, TILE_OH, OW) out_dtype (lane-dense last dim)
    # xw:   (classes*Hf, OW) f32 scratch: W-upsampled planes, built once/image
    # y:    (classes, TILE_OH, OW) f32 scratch: stage-2 logits (bounds live vregs)
    classes = sm_ref.shape[1]
    hf = uh_ref.shape[1]
    wf = x_ref.shape[3]

    # Stage 1 (once per image, first OH tile): ONE large-M matmul for all classes.
    @pl.when(pl.program_id(1) == 0)
    def _():
        x2d = x_ref[0].reshape(classes * hf, wf)           # free: Hf % 8 == 0
        xw_ref[...] = jnp.dot(x2d, uwt_ref[...],
                              preferred_element_type=jnp.float32)

    # Stage 2 (every OH tile): per-class H-upsample written into VMEM scratch.
    uh = uh_ref[...]
    for c in range(classes):
        y_ref[c] = jnp.dot(uh, xw_ref[pl.ds(c * hf, hf), :],
                           preferred_element_type=jnp.float32)

    # Class-axis softmax on the stacked (classes, TILE_OH, OW) array:
    # axis-0 reductions are pure per-lane VPU work (class is a major dim, no XLU).
    ys = y_ref[...]
    m = jnp.max(ys, axis=0, keepdims=True)
    shifted = ys - m
    e = jnp.exp(shifted)
    s = jnp.sum(e, axis=0, keepdims=True)
    inv_s = 1.0 / s                       # exact reciprocal, computed ONCE
    log_s = jnp.log(s)
    sm_ref[0] = (e * inv_s).astype(sm_ref.dtype)
    logsm_ref[0] = (shifted - log_s).astype(logsm_ref.dtype)


# ----------------------------------------------------------------------------
# forward wrapper
# ----------------------------------------------------------------------------
def drnseg_linearada_forward(x_feat, ds, os_, w_seg, b_seg, uh, uwt,
                             *, matmul_dtype=jnp.bfloat16,
                             out_dtype=jnp.float32):
    """Mirrors DRNSegLinearAda.forward (post-backbone).

    x_feat: (N, out_dim, Hf, Wf) backbone features (NCHW, f32)
    uh:  (OH, Hf) bilinear H-upsample matrix
    uwt: (Wf, OW) transposed bilinear W-upsample matrix (precomputed once)
    returns: (log_softmax(y), x_seg, softmax(y))
    """
    del ds, os_  # consumed only by the missing backbone
    N, C_in, Hf, Wf = x_feat.shape
    classes = w_seg.shape[0]
    OH, OW = uh.shape[0], uwt.shape[1]
    HW = Hf * Wf

    vmem_cap = _vmem_capacity_bytes()
    vmem_limit = max(32 * 1024 * 1024, vmem_cap - 16 * 1024 * 1024)

    # --- self.seg : 1x1 conv, blocked directly in NCHW (free reshapes only) ----
    # HBM-bandwidth bound: big lane-dense tiles, sized from this generation's VMEM.
    bytes_per_col = 2 * (4 * C_in + 4 * classes)          # double-buffered in + out
    seg_cap = max(128, min(8192, int(vmem_limit * 0.6) // bytes_per_col))
    tile_m = _pick_tile(HW, cap=int(seg_cap), multiple=128)

    x_flat = x_feat.reshape(N, C_in, HW)  # free row-major reshape; NO dtype cast here
    seg_flat = pl.pallas_call(
        functools.partial(_seg_kernel, matmul_dtype=matmul_dtype),
        out_shape=jax.ShapeDtypeStruct((N, classes, HW), jnp.float32),
        grid=(N, HW // tile_m),
        in_specs=[
            pl.BlockSpec((1, C_in, tile_m), lambda n, m: (n, 0, m)),
            pl.BlockSpec((classes, C_in), lambda n, m: (0, 0)),
            pl.BlockSpec((classes, 1), lambda n, m: (0, 0)),
        ],
        out_specs=pl.BlockSpec((1, classes, tile_m), lambda n, m: (n, 0, m)),
        compiler_params=pltpu.CompilerParams(
            dimension_semantics=("parallel", "parallel"),
            vmem_limit_bytes=vmem_limit),
    )(x_flat, w_seg, b_seg.reshape(classes, 1))
    x_seg = seg_flat.reshape(N, classes, Hf, Wf)          # NCHW, f32

    # --- fused self.up (depthwise bilinear deconv) + LogSoftmax / Softmax ------
    # y = U_h @ x_seg[n,c] @ U_w^T never touches HBM; softmax done in-kernel.
    out_bytes = jnp.dtype(out_dtype).itemsize
    fixed = (4 * classes * Hf * OW            # xw scratch
             + 2 * 4 * classes * Hf * Wf      # x block (double-buffered)
             + 2 * 4 * Wf * OW)               # uwt (double-buffered)
    per_row = (2 * 2 * out_bytes * classes * OW   # two outputs, double-buffered
               + 4 * classes * OW                 # y scratch
               + 2 * 4 * Hf)                      # uh tile, double-buffered
    oh_budget = int(vmem_limit * 0.8) - fixed
    oh_cap = max(8, min(128, oh_budget // per_row))
    tile_oh = _pick_tile(OH, cap=int(oh_cap), multiple=8)

    logsm, sm = pl.pallas_call(
        _up_softmax_kernel,
        out_shape=(
            jax.ShapeDtypeStruct((N, classes, OH, OW), out_dtype),
            jax.ShapeDtypeStruct((N, classes, OH, OW), out_dtype),
        ),
        grid=(N, OH // tile_oh),
        in_specs=[
            pl.BlockSpec((1, classes, Hf, Wf), lambda n, h: (n, 0, 0, 0)),
            pl.BlockSpec((tile_oh, Hf), lambda n, h: (h, 0)),
            pl.BlockSpec((Wf, OW), lambda n, h: (0, 0)),
        ],
        out_specs=(
            pl.BlockSpec((1, classes, tile_oh, OW), lambda n, h: (n, 0, h, 0)),
            pl.BlockSpec((1, classes, tile_oh, OW), lambda n, h: (n, 0, h, 0)),
        ),
        scratch_shapes=[
            pltpu.VMEM((classes * Hf, OW), jnp.float32),       # xw (stage-1)
            pltpu.VMEM((classes, tile_oh, OW), jnp.float32),   # y  (stage-2)
        ],
        compiler_params=pltpu.CompilerParams(
            dimension_semantics=("parallel", "arbitrary"),
            vmem_limit_bytes=vmem_limit),
    )(x_seg, uh, uwt)

    return logsm, x_seg, sm


# ----------------------------------------------------------------------------
# demo
# ----------------------------------------------------------------------------
if __name__ == "__main__":
    key = jax.random.PRNGKey(0)
    k_feat, k_seg = jax.random.split(key)

    N, out_dim, Hf, Wf, classes = 2, 32, 8, 8, 4  # small synthetic shapes

    # backbone output feature map (stand-in for drn_d_22_linearada(x, ds, os))
    x_feat = jax.random.normal(k_feat, (N, out_dim, Hf, Wf), jnp.float32)
    ds = jnp.zeros((N,), jnp.float32)   # placeholder, ignored
    os_ = jnp.zeros((N,), jnp.float32)  # placeholder, ignored

    w_seg, b_seg = init_seg_params(k_seg, out_dim, classes)
    uh = _upsample_matrix(Hf)            # (8*Hf, Hf)
    uwt = _upsample_matrix(Wf).T         # (Wf, 8*Wf), transposed once at init

    logsm, x_seg, sm = jax.block_until_ready(
        drnseg_linearada_forward(x_feat, ds, os_, w_seg, b_seg, uh, uwt)
    )

    assert logsm.shape == (N, classes, 8 * Hf, 8 * Wf)
    assert x_seg.shape == (N, classes, Hf, Wf)
    assert sm.shape == (N, classes, 8 * Hf, 8 * Wf)
    # softmax sanity: probabilities over classes sum to 1
    assert jnp.allclose(jnp.sum(sm, axis=1), 1.0, atol=1e-5)
    assert jnp.allclose(jnp.exp(logsm), sm, atol=1e-5)

    print("KERNEL_OK")
</pallas_src>

<mosaic_0001>
module attributes {stable_mosaic.version = 11 : i64} {
  func.func @_seg_kernel(%arg0: i32, %arg1: i32, %arg2: memref<1x32x64xf32, #tpu.memory_space<vmem>>, %arg3: memref<4x32xf32, #tpu.memory_space<vmem>>, %arg4: memref<4x1xf32, #tpu.memory_space<vmem>>, %arg5: memref<1x4x64xf32, #tpu.memory_space<vmem>>) attributes {dimension_semantics = [#tpu.dimension_semantics<parallel>, #tpu.dimension_semantics<parallel>], iteration_bounds = array<i64: 2, 1>, scalar_prefetch = 0 : i64, scratch_operands = 0 : i64, tpu.core_type = #tpu.core_type<tc>, window_params = [{transform_indices = @transform_0, window_bounds = array<i64: 1, 32, 64>}, {pipeline_mode = #tpu.pipeline_mode<synchronous>, transform_indices = @transform_1, window_bounds = array<i64: 4, 32>}, {pipeline_mode = #tpu.pipeline_mode<synchronous>, transform_indices = @transform_2, window_bounds = array<i64: 4, 1>}, {transform_indices = @transform_3, window_bounds = array<i64: 1, 4, 64>}]} {
    %c0 = arith.constant 0 : index
    %c0_0 = arith.constant 0 : index
    %c0_1 = arith.constant 0 : index
    %0 = vector.load %arg2[%c0, %c0_0, %c0_1] : memref<1x32x64xf32, #tpu.memory_space<vmem>>, vector<1x32x64xf32>
    %1 = vector.shape_cast %0 : vector<1x32x64xf32> to vector<32x64xf32>
    %c0_2 = arith.constant 0 : index
    %c0_3 = arith.constant 0 : index
    %2 = vector.load %arg3[%c0_2, %c0_3] : memref<4x32xf32, #tpu.memory_space<vmem>>, vector<4x32xf32>
    %3 = arith.truncf %1 : vector<32x64xf32> to vector<32x64xbf16>
    %4 = arith.truncf %2 : vector<4x32xf32> to vector<4x32xbf16>
    %cst = arith.constant dense<0.000000e+00> : vector<4x64xf32>
    %5 = tpu.matmul %4, %3, %cst {dimension_numbers = #tpu.dot_dimension_numbers<[1], [0], [0], [1], [0, 0, 1, 1], [], []>} : vector<4x32xbf16>, vector<32x64xbf16>, vector<4x64xf32> -> vector<4x64xf32>
    %c0_4 = arith.constant 0 : index
    %c0_5 = arith.constant 0 : index
    %6 = vector.load %arg4[%c0_4, %c0_5] : memref<4x1xf32, #tpu.memory_space<vmem>>, vector<4x1xf32>
    %7 = vector.broadcast %6 : vector<4x1xf32> to vector<4x64xf32>
    %8 = arith.addf %5, %7 : vector<4x64xf32>
    %c0_6 = arith.constant 0 : index
    %c0_7 = arith.constant 0 : index
    %c0_8 = arith.constant 0 : index
    %9 = vector.load %arg5[%c0_6, %c0_7, %c0_8] : memref<1x4x64xf32, #tpu.memory_space<vmem>>, vector<1x4x64xf32>
    %10 = vector.shape_cast %9 : vector<1x4x64xf32> to vector<4x64xf32>
    %11 = vector.shape_cast %8 : vector<4x64xf32> to vector<1x4x64xf32>
    tpu.vector_store %arg5[%c0_6, %c0_7, %c0_8], %11 {strides = array<i32>} : memref<1x4x64xf32, #tpu.memory_space<vmem>>, vector<1x4x64xf32>,
    return
  }
  func.func @transform_0(%arg0: i32, %arg1: i32) -> (i32, i32, i32) {
    %c0_i32 = arith.constant 0 : i32
    %c0_i32_0 = arith.constant 0 : i32
    return %arg0, %c0_i32, %arg1 : i32, i32, i32
  }
  func.func @transform_1(%arg0: i32, %arg1: i32) -> (i32, i32) {
    %c0_i32 = arith.constant 0 : i32
    %c0_i32_0 = arith.constant 0 : i32
    %c0_i32_1 = arith.constant 0 : i32
    return %c0_i32, %c0_i32_0 : i32, i32
  }
  func.func @transform_2(%arg0: i32, %arg1: i32) -> (i32, i32) {
    %c0_i32 = arith.constant 0 : i32
    %c0_i32_0 = arith.constant 0 : i32
    %c0_i32_1 = arith.constant 0 : i32
    return %c0_i32, %c0_i32_0 : i32, i32
  }
  func.func @transform_3(%arg0: i32, %arg1: i32) -> (i32, i32, i32) {
    %c0_i32 = arith.constant 0 : i32
    %c0_i32_0 = arith.constant 0 : i32
    return %arg0, %c0_i32, %arg1 : i32, i32, i32
  }
}

</mosaic_0001>

<llo_original>
// kernel: tpu_custom_call.1
$region0: #{tpu_custom_call.1}
  #allocation0 [shape = 'u32[]', space=smem, size = 0x4, offset = 0x4, fixed_abs, tag = 'smem constant byte address 0x4 - core index']
  #allocation1 [shape = 'u32[72,128]{1,0:T(1,128)}', space=vmem, size = 0x9000, scoped, tag = 'internal scratch']
  %s0 = inlined_call_operand.hbm [shape: f32[2,32,64], index: 0, kind: input, shape index: {}]
  %s1 = inlined_call_operand.vmem [shape: f32[4,32], index: 1, kind: input, shape index: {}]
  %s2 = inlined_call_operand.vmem [shape: f32[4,1], index: 2, kind: input, shape index: {}]
  %s3 = inlined_call_operand.hbm [shape: f32[2,4,64], index: 3, kind: output, shape index: {}]
  %s4 = sld [smem:[#allocation0]]
  $region49: #{tpu_custom_call.1} parent=0
    _
  %s6 = ssub.s32 1, %s4
  %s7 = scalar_select 0, %s6, %s4
  $region1: #{tpu_custom_call.1} parent=0
    #allocation2 [shape = 'u8[32768]{0}', space=vmem, size = 0x8000, scoped, tag = 'input window, operand 0']
    #allocation3 [shape = 's32[2]{0}', space=sflag, size = 0x8, scoped, tag = 'scoped memory for tpu_custom_call.1']
    #allocation4 [shape = 's32[2]{0}', space=sflag, size = 0x8, scoped, tag = 'scoped memory for tpu_custom_call.1']
    #allocation5 [shape = 'u8[4096]{0}', space=vmem, size = 0x1000, scoped, tag = 'output window, operand 0']
    %8 = vsyncpa [#allocation3], 0
    %s9 = scalar_lea.sflag [#allocation3], 1
    %10 = vsyncpa %s9, 0
    %11 = vsyncpa [#allocation4], 0
    %s12 = scalar_lea.sflag [#allocation4], 1
    %13 = vsyncpa %s12, 0
    loop: start=0, step=1, limit=4
    $region2: #{tpu_custom_call.1} parent=1 // loop_pre_header
      _
    $region3: #{tpu_custom_call.1} parent=1 // loop_header
      %s15 = sphi 0, %s19
      %p16 = scmp.ge.s32.totalorder %s15, 4
      %s22 = sphi 0, %s34
      %s23 = sphi 0, %s30
      %s24 = sphi 0, %s22
      %s25 = sphi 0, %s23
      %s26 = sphi 0, %s24
      %s27 = sphi 0, %s25
      %s39 = sphi 0, %s41
      %s42 = sphi 0, %s39
      %s43 = sphi 0, %s42
      %s59 = sphi 0, %s43
      %s63 = sphi 0, %s63
      %s65 = sphi 0, %s63
      %s66 = sphi 0, %s65
      %s80 = sphi 0, %s66
      %s84 = sphi 0, %s84
      %s86 = sphi 0, %s84
      %s87 = sphi 0, %s86
      %s101 = sphi 0, %s87
      %s109 = sphi 0, %s111
      %s112 = sphi 0, %s109
      %s113 = sphi 0, %s112
      %s129 = sphi 0, %s113
    $region4: #{tpu_custom_call.1} parent=1 // loop_header_branch
      %18 = sbr.rel (%p16) target = $region8
    $region5: #{tpu_custom_call.1} parent=1 // loop_body
      %s20 = ssub.s32 %s15, 1
      %s21 = ssub.s32 %s15, 2
      %s28 = sadd.s32 1, %s23
      %p29 = scmp.ge.s32.totalorder %s28, 1
      %s30 = scalar_select %p29, 0, %s28
      %s31 = sadd.s32 1, %s22
      %s32 = scalar_select %p29, %s31, %s22
      %p33 = scmp.ge.s32.totalorder %s32, 2
      %s34 = scalar_select %p33, 0, %s32
      %s35 = ssub.s32 %s22, %s34
      %s36 = ssub.s32 %s23, %s30
      %s37 = sor.u32 %s35, %s36
      %p38 = scmp.eq.s32.totalorder %s37, 0
      %s40 = sadd.s32 %s39, 1
      %s41 = scalar_select %p38, %s39, %s40
      %p44 = pneg %p38
      %p45 = scmp.eq.s32.totalorder %s15, 1
      %p46 = por %p44, %p45
      %p47 = scmp.ne.s32.totalorder %s39, %s42
      %p48 = scmp.eq.s32.totalorder %s15, 0
      %p49 = por %p47, %p48
      %p50 = scmp.ne.s32.totalorder %s39, %s42
      %p51 = scmp.eq.s32.totalorder %s20, 1
      %p52 = por %p50, %p51
      %p53 = scmp.ne.s32.totalorder %s42, %s43
      %p54 = scmp.eq.s32.totalorder %s20, 0
      %p55 = por %p53, %p54
      %p56 = scmp.ne.s32.totalorder %s42, %s43
      %p57 = scmp.eq.s32.totalorder %s21, 1
      %p58 = por %p56, %p57
      %p60 = scmp.ne.s32.totalorder %s43, %s59
      %p61 = scmp.eq.s32.totalorder %s21, 0
      %p62 = por %p60, %p61
      %s64 = sadd.s32 %s63, 1
      %p67 = scmp.eq.s32.totalorder %s15, 1
      %p68 = scmp.ne.s32.totalorder %s63, %s65
      %p69 = scmp.eq.s32.totalorder %s15, 0
      %p70 = por %p68, %p69
      %p71 = scmp.ne.s32.totalorder %s63, %s65
      %p72 = scmp.eq.s32.totalorder %s20, 1
      %p73 = por %p71, %p72
      %p74 = scmp.ne.s32.totalorder %s65, %s66
      %p75 = scmp.eq.s32.totalorder %s20, 0
      %p76 = por %p74, %p75
      %p77 = scmp.ne.s32.totalorder %s65, %s66
      %p78 = scmp.eq.s32.totalorder %s21, 1
      %p79 = por %p77, %p78
      %p81 = scmp.ne.s32.totalorder %s66, %s80
      %p82 = scmp.eq.s32.totalorder %s21, 0
      %p83 = por %p81, %p82
      %s85 = sadd.s32 %s84, 1
      %p88 = scmp.eq.s32.totalorder %s15, 1
      %p89 = scmp.ne.s32.totalorder %s84, %s86
      %p90 = scmp.eq.s32.totalorder %s15, 0
      %p91 = por %p89, %p90
      %p92 = scmp.ne.s32.totalorder %s84, %s86
      %p93 = scmp.eq.s32.totalorder %s20, 1
      %p94 = por %p92, %p93
      %p95 = scmp.ne.s32.totalorder %s86, %s87
      %p96 = scmp.eq.s32.totalorder %s20, 0
      %p97 = por %p95, %p96
      %p98 = scmp.ne.s32.totalorder %s86, %s87
      %p99 = scmp.eq.s32.totalorder %s21, 1
      %p100 = por %p98, %p99
      %p102 = scmp.ne.s32.totalorder %s87, %s101
      %p103 = scmp.eq.s32.totalorder %s21, 0
      %p104 = por %p102, %p103
      %s105 = ssub.s32 %s22, %s34
      %s106 = ssub.s32 %s23, %s30
      %s107 = sor.u32 %s105, %s106
      %p108 = scmp.eq.s32.totalorder %s107, 0
      %s110 = sadd.s32 %s109, 1
      %s111 = scalar_select %p108, %s109, %s110
      %p114 = pneg %p108
      %p115 = scmp.eq.s32.totalorder %s15, 1
      %p116 = por %p114, %p115
      %p117 = scmp.ne.s32.totalorder %s109, %s112
      %p118 = scmp.eq.s32.totalorder %s15, 0
      %p119 = por %p117, %p118
      %p120 = scmp.ne.s32.totalorder %s109, %s112
      %p121 = scmp.eq.s32.totalorder %s20, 1
      %p122 = por %p120, %p121
      %p123 = scmp.ne.s32.totalorder %s112, %s113
      %p124 = scmp.eq.s32.totalorder %s20, 0
      %p125 = por %p123, %p124
      %p126 = scmp.ne.s32.totalorder %s112, %s113
      %p127 = scmp.eq.s32.totalorder %s21, 1
      %p128 = por %p126, %p127
      %p130 = scmp.ne.s32.totalorder %s113, %s129
      %p131 = scmp.eq.s32.totalorder %s21, 0
      %p132 = por %p130, %p131
      %p133 = scmp.le.s32.totalorder 1, %s15
      %p134 = scmp.lt.s32.totalorder %s15, 3
      %p135 = pnand %p133, %p134
      %p136 = pneg %p135
      // Predicated region
      $region9: #{tpu_custom_call.1} parent=5 // pred_check
        _
      $region10: #{tpu_custom_call.1} parent=5 // pred_check_branch
        %138 = sbr.rel (%p135) target = $region12
      $region11: #{tpu_custom_call.1} parent=5 // pred_region
        %s139 = ssub.s32 %s15, 1
        // Predicated region
        $region13: #{tpu_custom_call.1} parent=11 // pred_check
          %p140 = pneg %p76
        $region14: #{tpu_custom_call.1} parent=11 // pred_check_branch
          %142 = sbr.rel (%p140) target = $region16
        $region15: #{tpu_custom_call.1} parent=11 // pred_region
          _
        $region16: #{tpu_custom_call.1} parent=11 // pred_fallthru
          _
        // Predicated region
        $region17: #{tpu_custom_call.1} parent=11 // pred_check
          %p143 = pneg %p97
        $region18: #{tpu_custom_call.1} parent=11 // pred_check_branch
          %145 = sbr.rel (%p143) target = $region20
        $region19: #{tpu_custom_call.1} parent=11 // pred_region
          _
        $region20: #{tpu_custom_call.1} parent=11 // pred_fallthru
          _
      $region12: #{tpu_custom_call.1} parent=5 // pred_fallthru
        _
      %p146 = scmp.lt.s32.totalorder %s15, 2
      // Predicated region
      $region21: #{tpu_custom_call.1} parent=5 // pred_check
        %p147 = pneg %p146
      $region22: #{tpu_custom_call.1} parent=5 // pred_check_branch
        %149 = sbr.rel (%p147) target = $region24
      $region23: #{tpu_custom_call.1} parent=5 // pred_region
        // Predicated region
        $region25: #{tpu_custom_call.1} parent=23 // pred_check
          %p150 = pneg %p49
        $region26: #{tpu_custom_call.1} parent=23 // pred_check_branch
          %152 = sbr.rel (%p150) target = $region28
        $region27: #{tpu_custom_call.1} parent=23 // pred_region
          %s153 = sand.u32 %s39, 1
          %s154 = scalar_lea.sflag [#allocation3], %s153
          %s155 = sand.u32 %s39, 1
          %s156 = smul.addr %s155, 32
          %s157 = scalar_lea.vmem [#allocation2], %s156
          %159 = vsyncadd %s154, 0
          %s160 = smul.addr %s22, 4
          %s161 = sadd.s32 %s23, %s160
          %s162 = smul.addr %s161, 8
          %s163 = scalar_lea.hbm %s0, %s162
          %s164 = sshll.u32 %s163, 4
          %s165 = int_to_ptr.hbm [resolvable:$true] %s164
          %s166 = sshll.u32 %s157, 4
          %s167 = int_to_ptr.vmem [resolvable:$true] %s166
          %172 = dma.hbm_to_vmem [thread:$0]  %s165, 512, %s167, %s154, 128, 128, 8
        $region28: #{tpu_custom_call.1} parent=23 // pred_fallthru
          _
      $region24: #{tpu_custom_call.1} parent=5 // pred_fallthru
        _
      %p173 = scmp.le.s32.totalorder 1, %s15
      %p174 = scmp.lt.s32.totalorder %s15, 3
      %p175 = pnand %p173, %p174
      %p176 = pneg %p175
      // Predicated region
      $region29: #{tpu_custom_call.1} parent=5 // pred_check
        _
      $region30: #{tpu_custom_call.1} parent=5 // pred_check_branch
        %178 = sbr.rel (%p175) target = $region32
      $region31: #{tpu_custom_call.1} parent=5 // pred_region
        %s179 = ssub.s32 %s15, 1
        %s180 = sand.u32 %s42, 1
        %s181 = scalar_lea.sflag [#allocation3], %s180
        %s182 = sand.u32 %s42, 1
        %s183 = smul.addr %s182, 32
        %s184 = scalar_lea.vmem [#allocation2], %s183
        // Predicated region
        $region33: #{tpu_custom_call.1} parent=31 // pred_check
          %p185 = pneg %p55
        $region34: #{tpu_custom_call.1} parent=31 // pred_check_branch
          %187 = sbr.rel (%p185) target = $region36
        $region35: #{tpu_custom_call.1} parent=31 // pred_region
          %189 = dma.done %s181, 512
        $region36: #{tpu_custom_call.1} parent=31 // pred_fallthru
          _
        %s190 = sand.u32 %s42, 1
        %s191 = scalar_lea.sflag [#allocation3], %s190
        %s192 = sand.u32 %s42, 1
        %s193 = smul.addr %s192, 32
        %s194 = scalar_lea.vmem [#allocation2], %s193
        %p195 = pneg %p55
        %p196 = pneg %p52
        %p197 = pneg %p76
        %p198 = pneg %p73
        %p199 = pneg %p97
        %p200 = pneg %p94
        %p201 = pneg %p125
        %p202 = pneg %p122
        %s203 = sand.u32 %s112, 1
        %s204 = scalar_lea.sflag [#allocation4], %s203
        %s205 = sand.u32 %s112, 1
        %s206 = smul.addr %s205, 4
        %s207 = scalar_lea.vmem [#allocation5], %s206
        %v209 = vld [vmem:[%s184] sm:$0xff]
        %v210 = vld [vmem:[%s184 + $0x8] sm:$0xff]
        %v211 = vld [vmem:[%s184 + $0x10] sm:$0xff]
        %v212 = vld [vmem:[%s184 + $0x18] sm:$0xff]
        %v213 = vld [vmem:[%s1] sm:$0xf]
        %v214 = vpack.c.bf16 %v210, %v209
        %v215 = vpack.c.bf16 %v212, %v211
        %v216 = vpack.c.bf16 %v213, %v213
        %v217 = vld [vmem:[%s2] sm:$0xf]
        %219 = vset.pattern.permute.xlu0 0
        %220 = vperm.xlu0 %219, %v217
        %v221 = vpop.permute.xlu0 %220
        %vm223 = vcmask 261120
        %v225 = vsel %vm223, %v216, 0
        %227 = vmatpush.bf16.msra.mxu0 0
        %228 = vmatpush.bf16.msra.mxu0 0
        %229 = vmatpush.bf16.msra.mxu0 0
        %230 = vmatpush.bf16.msra.mxu0 0
        %231 = vmatpush.bf16.msra.mxu0 0
        %232 = vmatpush.bf16.msra.mxu0 0
        %233 = vmatpush.bf16.msra.mxu0 %v215
        %234 = vmatpush.bf16.msra.mxu0 %v214
        %235 = vmatmul.bf16.gmra.mxu0 %v225
        %v236 = vpop.f32.mrf.mxu0
        %v237 = vadd.f32 %v221, %v236
        %v238 = vpop.f32.mrf.mxu0
        %239 = vdwg.mxu0
        %vm240 = vcmask 519168
        %241 = vst.msk [vmem:[%s207] sm:$0xf] %vm240, %v237
        %s242 = sand.u32 %s112, 1
        %s243 = scalar_lea.sflag [#allocation4], %s242
        %s244 = sand.u32 %s112, 1
        %s245 = smul.addr %s244, 4
        %s246 = scalar_lea.vmem [#allocation5], %s245
        // Predicated region
        $region37: #{tpu_custom_call.1} parent=31 // pred_check
          %p247 = pneg %p122
        $region38: #{tpu_custom_call.1} parent=31 // pred_check_branch
          %249 = sbr.rel (%p247) target = $region40
        $region39: #{tpu_custom_call.1} parent=31 // pred_region
          %251 = vsyncadd %s243, 0
          %s252 = sadd.s32 %s25, %s24
          %s253 = smul.addr %s252, 4
          %s254 = scalar_lea.hbm %s3, %s253
          %s256 = sshll.u32 %s246, 4
          %s257 = int_to_ptr.vmem [resolvable:$true] %s256
          %s258 = sshll.u32 %s254, 4
          %s259 = int_to_ptr.hbm [resolvable:$true] %s258
          %261 = dma.vmem_to_hbm [thread:$0]  %s257, 64, %s259, %s243
        $region40: #{tpu_custom_call.1} parent=31 // pred_fallthru
          _
      $region32: #{tpu_custom_call.1} parent=5 // pred_fallthru
        _
      %p262 = scmp.le.s32.totalorder 2, %s15
      // Predicated region
      $region41: #{tpu_custom_call.1} parent=5 // pred_check
        %p263 = pneg %p262
      $region42: #{tpu_custom_call.1} parent=5 // pred_check_branch
        %265 = sbr.rel (%p263) target = $region44
      $region43: #{tpu_custom_call.1} parent=5 // pred_region
        %s266 = ssub.s32 %s15, 2
        // Predicated region
        $region45: #{tpu_custom_call.1} parent=43 // pred_check
          %p267 = pneg %p128
        $region46: #{tpu_custom_call.1} parent=43 // pred_check_branch
          %269 = sbr.rel (%p267) target = $region48
        $region47: #{tpu_custom_call.1} parent=43 // pred_region
          %s270 = sand.u32 %s113, 1
          %s271 = scalar_lea.sflag [#allocation4], %s270
          %s272 = sand.u32 %s113, 1
          %s273 = smul.addr %s272, 4
          %s274 = scalar_lea.vmem [#allocation5], %s273
          %276 = dma.done %s271, 64
        $region48: #{tpu_custom_call.1} parent=43 // pred_fallthru
          _
      $region44: #{tpu_custom_call.1} parent=5 // pred_fallthru
        _
    $region6: #{tpu_custom_call.1} parent=1 // loop_footer
      %s19 = sadd.s32 1, %s15
    $region7: #{tpu_custom_call.1} parent=1 // loop_footer_branch
      %14 = sbr.rel target = $region3
    $region8: #{tpu_custom_call.1} parent=1 // loop_exit
      _
    %277 = vsyncpa [#allocation3], 1
    %s278 = scalar_lea.sflag [#allocation3], 1
    %279 = vsyncpa %s278, 1
    %280 = vsyncpa [#allocation4], 1
    %s281 = scalar_lea.sflag [#allocation4], 1
    %282 = vsyncpa %s281, 1

</llo_original>
